<compile_context>
chip_gen: v7x
topology: tpu7x:2x2x1
jax: 0.10.0
libtpu: 0.0.40
codegen_flags: <defaults>
</compile_context>

<pallas_src>
import jax
import jax.numpy as jnp
from jax.experimental import pallas as pl
from jax.experimental.pallas import tpu as pltpu


def _embeddings_kernel(x_ref, w_ref, off_ref, o_ref):
    # x_ref  : (1, TS, K)  flattened patch pixels (seq row 0 is all-zero = CLS slot)
    # w_ref  : (H, K)      flattened Conv2d weight, PyTorch [out, in*kh*kw] layout
    # off_ref: (TS, H)     per-position additive offset (cls/bias + position embedding)
    # o_ref  : (1, TS, H)
    x = x_ref[0]
    acc = jax.lax.dot_general(
        x, w_ref[...],
        dimension_numbers=(((1,), (1,)), ((), ())),   # contract K with K; no transpose
        preferred_element_type=jnp.float32)
    o_ref[0] = (acc + off_ref[...].astype(jnp.float32)).astype(o_ref.dtype)


def _pick_seq_tile(seq_len, cap=512):
    # Largest divisor of seq_len that is sublane-aligned (multiple of 8) and <= cap;
    # otherwise fall back to the full sequence (full-extent blocks are always legal,
    # e.g. ViT-Base seq=197).
    for t in range(min(seq_len, cap), 7, -1):
        if seq_len % t == 0 and t % 8 == 0:
            return t
    return seq_len


def vit_embeddings(pixel_values, conv_weight, conv_bias, cls_token,
                   position_embeddings, *, patch_size):
    """Pallas equivalent of ViTEmbeddings.forward (eval mode, no masking/interpolation).

    pixel_values        : [B, C, H, W]
    conv_weight         : [hidden, C, ph, pw]   (PyTorch Conv2d layout)
    conv_bias           : [hidden]
    cls_token           : [1, 1, hidden]
    position_embeddings : [1, num_patches + 1, hidden]
    """
    # TODO(synk): bool_masked_pos mask-token mixing not implemented (use_mask_token path).
    # TODO(synk): interpolate_pos_encoding (bicubic resize of position embeddings) not implemented.
    # Dropout is identity in eval mode (HF ViT inference); training-mode dropout not implemented.
    if isinstance(patch_size, (tuple, list)):
        ph, pw = patch_size
    else:
        ph = pw = patch_size

    B, C, Hin, Win = pixel_values.shape
    nh, nw = Hin // ph, Win // pw
    num_patches = nh * nw
    S = num_patches + 1
    Hd = conv_weight.shape[0]
    K = C * ph * pw

    # --- layout-only glue (no FLOPs): extract non-overlapping patches -------------
    x = pixel_values.reshape(B, C, nh, ph, nw, pw)
    x = x.transpose(0, 2, 4, 1, 3, 5).reshape(B, num_patches, K)
    # Prepend one all-zero "patch" per batch: sequence position 0 (CLS slot) then gets
    # zero contribution from the projection; its value comes entirely from the offset.
    x = jnp.pad(x, ((0, 0), (1, 0), (0, 0)))

    # Weight kept in PyTorch layout; contracted on its last dim inside the kernel
    # (no wrapper-side transpose materialized in HBM).
    w = conv_weight.reshape(Hd, K)

    pos = position_embeddings.reshape(S, Hd)
    offset = jnp.concatenate(
        [cls_token.reshape(1, Hd) + pos[:1],
         pos[1:] + conv_bias.reshape(1, Hd)],
        axis=0)                                   # (S, Hd), tiny

    TS = _pick_seq_tile(S)
    grid = (B, S // TS)

    itemsize = jnp.dtype(pixel_values.dtype).itemsize
    cost = pl.CostEstimate(
        flops=2 * B * S * K * Hd,
        transcendentals=0,
        bytes_accessed=int(x.size * jnp.dtype(x.dtype).itemsize
                           + w.size * jnp.dtype(w.dtype).itemsize
                           + offset.size * jnp.dtype(offset.dtype).itemsize
                           + B * S * Hd * itemsize))

    out = pl.pallas_call(
        _embeddings_kernel,
        out_shape=jax.ShapeDtypeStruct((B, S, Hd), pixel_values.dtype),
        grid_spec=pltpu.PrefetchScalarGridSpec(
            num_scalar_prefetch=0,
            grid=grid,
            in_specs=[
                pl.BlockSpec((1, TS, K), lambda b, s: (b, s, 0)),
                pl.BlockSpec((Hd, K), lambda b, s: (0, 0)),     # weight resident in VMEM
                pl.BlockSpec((TS, Hd), lambda b, s: (s, 0)),
            ],
            out_specs=pl.BlockSpec((1, TS, Hd), lambda b, s: (b, s, 0)),
        ),
        compiler_params=pltpu.CompilerParams(
            dimension_semantics=("parallel", "parallel")),
        cost_estimate=cost,
    )(x, w, offset)
    return out


if __name__ == "__main__":
    # Small config consistent with the module: batch=2, channels=4, image 16x16,
    # patch 4x4 -> 16 patches (+1 CLS = 17), hidden=32.
    B, C, IMG, P, Hd = 2, 4, 16, 4, 32
    nh = nw = IMG // P
    S = nh * nw + 1

    key = jax.random.PRNGKey(0)
    k1, k2, k3, k4, k5 = jax.random.split(key, 5)
    pixel_values = jax.random.normal(k1, (B, C, IMG, IMG), dtype=jnp.float32)
    conv_weight = jax.random.normal(k2, (Hd, C, P, P), dtype=jnp.float32) * 0.02
    conv_bias = jax.random.normal(k3, (Hd,), dtype=jnp.float32) * 0.02
    cls_token = jax.random.normal(k4, (1, 1, Hd), dtype=jnp.float32) * 0.02
    position_embeddings = jax.random.normal(k5, (1, S, Hd), dtype=jnp.float32) * 0.02

    out = vit_embeddings(pixel_values, conv_weight, conv_bias, cls_token,
                         position_embeddings, patch_size=P)
    out = jax.block_until_ready(out)
    assert out.shape == (B, S, Hd)

    # Reference in plain JAX: Conv2d(stride=patch) -> flatten(2).transpose(1,2)
    # -> concat CLS -> add position embeddings; dropout is identity in eval mode.
    conv = jax.lax.conv_general_dilated(
        pixel_values, conv_weight, window_strides=(P, P), padding="VALID",
        dimension_numbers=("NCHW", "OIHW", "NCHW"),
        precision=jax.lax.Precision.HIGHEST)
    patches_ref = (conv + conv_bias[None, :, None, None]).reshape(B, Hd, -1)
    patches_ref = jnp.transpose(patches_ref, (0, 2, 1))
    ref = jnp.concatenate(
        [jnp.broadcast_to(cls_token, (B, 1, Hd)), patches_ref], axis=1)
    ref = ref + position_embeddings

    max_err = float(jnp.max(jnp.abs(out - ref)))
    assert jnp.allclose(out, ref, atol=1e-3, rtol=1e-3), f"max abs err = {max_err}"

    print("KERNEL_OK")
</pallas_src>

<mosaic_0001>
module attributes {stable_mosaic.version = 11 : i64} {
  func.func @_embeddings_kernel(%arg0: i32, %arg1: i32, %arg2: memref<1x17x64xf32, #tpu.memory_space<vmem>>, %arg3: memref<32x64xf32, #tpu.memory_space<vmem>>, %arg4: memref<17x32xf32, #tpu.memory_space<vmem>>, %arg5: memref<1x17x32xf32, #tpu.memory_space<vmem>>) attributes {dimension_semantics = [#tpu.dimension_semantics<parallel>, #tpu.dimension_semantics<parallel>], iteration_bounds = array<i64: 2, 1>, scalar_prefetch = 0 : i64, scratch_operands = 0 : i64, tpu.core_type = #tpu.core_type<tc>, window_params = [{transform_indices = @transform_0, window_bounds = array<i64: 1, 17, 64>}, {pipeline_mode = #tpu.pipeline_mode<synchronous>, transform_indices = @transform_1, window_bounds = array<i64: 32, 64>}, {transform_indices = @transform_2, window_bounds = array<i64: 17, 32>}, {transform_indices = @transform_3, window_bounds = array<i64: 1, 17, 32>}]} {
    %c0 = arith.constant 0 : index
    %c0_0 = arith.constant 0 : index
    %c0_1 = arith.constant 0 : index
    %0 = vector.load %arg2[%c0, %c0_0, %c0_1] : memref<1x17x64xf32, #tpu.memory_space<vmem>>, vector<1x17x64xf32>
    %1 = vector.shape_cast %0 : vector<1x17x64xf32> to vector<17x64xf32>
    %c0_2 = arith.constant 0 : index
    %c0_3 = arith.constant 0 : index
    %2 = vector.load %arg3[%c0_2, %c0_3] : memref<32x64xf32, #tpu.memory_space<vmem>>, vector<32x64xf32>
    %cst = arith.constant dense<0.000000e+00> : vector<17x32xf32>
    %3 = tpu.matmul %1, %2, %cst {dimension_numbers = #tpu.dot_dimension_numbers<[1], [1], [0], [0], [0, 0, 1, 0], [], []>} : vector<17x64xf32>, vector<32x64xf32>, vector<17x32xf32> -> vector<17x32xf32>
    %c0_4 = arith.constant 0 : index
    %c0_5 = arith.constant 0 : index
    %4 = vector.load %arg4[%c0_4, %c0_5] : memref<17x32xf32, #tpu.memory_space<vmem>>, vector<17x32xf32>
    %5 = arith.addf %3, %4 : vector<17x32xf32>
    %c0_6 = arith.constant 0 : index
    %c0_7 = arith.constant 0 : index
    %c0_8 = arith.constant 0 : index
    %6 = vector.load %arg5[%c0_6, %c0_7, %c0_8] : memref<1x17x32xf32, #tpu.memory_space<vmem>>, vector<1x17x32xf32>
    %7 = vector.shape_cast %6 : vector<1x17x32xf32> to vector<17x32xf32>
    %8 = vector.shape_cast %5 : vector<17x32xf32> to vector<1x17x32xf32>
    tpu.vector_store %arg5[%c0_6, %c0_7, %c0_8], %8 {strides = array<i32>} : memref<1x17x32xf32, #tpu.memory_space<vmem>>, vector<1x17x32xf32>,
    return
  }
  func.func @transform_0(%arg0: i32, %arg1: i32) -> (i32, i32, i32) {
    %c0_i32 = arith.constant 0 : i32
    %c0_i32_0 = arith.constant 0 : i32
    return %arg0, %arg1, %c0_i32 : i32, i32, i32
  }
  func.func @transform_1(%arg0: i32, %arg1: i32) -> (i32, i32) {
    %c0_i32 = arith.constant 0 : i32
    %c0_i32_0 = arith.constant 0 : i32
    %c0_i32_1 = arith.constant 0 : i32
    return %c0_i32, %c0_i32_0 : i32, i32
  }
  func.func @transform_2(%arg0: i32, %arg1: i32) -> (i32, i32) {
    %c0_i32 = arith.constant 0 : i32
    %c0_i32_0 = arith.constant 0 : i32
    return %arg1, %c0_i32 : i32, i32
  }
  func.func @transform_3(%arg0: i32, %arg1: i32) -> (i32, i32, i32) {
    %c0_i32 = arith.constant 0 : i32
    %c0_i32_0 = arith.constant 0 : i32
    return %arg0, %arg1, %c0_i32 : i32, i32, i32
  }
}

</mosaic_0001>

<llo_original>
// kernel: tpu_custom_call.1
$region0: #{tpu_custom_call.1}
  #allocation0 [shape = 'u32[]', space=smem, size = 0x4, offset = 0x4, fixed_abs, tag = 'smem constant byte address 0x4 - core index']
  #allocation1 [shape = 'u32[144,128]{1,0:T(1,128)}', space=vmem, size = 0x12000, scoped, tag = 'internal scratch']
  %s0 = inlined_call_operand.vmem [shape: f32[2,17,64], index: 0, kind: input, shape index: {}]
  %s1 = inlined_call_operand.vmem [shape: f32[32,64], index: 1, kind: input, shape index: {}]
  %s2 = inlined_call_operand.vmem [shape: f32[17,32], index: 2, kind: input, shape index: {}]
  %s3 = inlined_call_operand.vmem [shape: f32[2,17,32], index: 3, kind: output, shape index: {}]
  %s4 = sld [smem:[#allocation0]]
  $region45: #{tpu_custom_call.1} parent=0
    _
  %s6 = ssub.s32 1, %s4
  %s7 = scalar_select 0, %s6, %s4
  loop: start=0, step=1, limit=4
  $region2: #{tpu_custom_call.1} parent=0 // loop_pre_header
    _
  $region3: #{tpu_custom_call.1} parent=0 // loop_header
    %s9 = sphi 0, %s13
    %p10 = scmp.ge.s32.totalorder %s9, 4
    %s16 = sphi 0, %s28
    %s17 = sphi 0, %s24
    %s18 = sphi 0, %s16
    %s19 = sphi 0, %s17
    %s20 = sphi 0, %s18
    %s21 = sphi 0, %s19
    %s33 = sphi 0, %s35
    %s36 = sphi 0, %s33
    %s37 = sphi 0, %s36
    %s53 = sphi 0, %s37
    %s57 = sphi 0, %s57
    %s59 = sphi 0, %s57
    %s60 = sphi 0, %s59
    %s74 = sphi 0, %s60
    %s80 = sphi 0, %s82
    %s83 = sphi 0, %s80
    %s84 = sphi 0, %s83
    %s100 = sphi 0, %s84
    %s108 = sphi 0, %s110
    %s111 = sphi 0, %s108
    %s112 = sphi 0, %s111
    %s128 = sphi 0, %s112
  $region4: #{tpu_custom_call.1} parent=0 // loop_header_branch
    %12 = sbr.rel (%p10) target = $region8
  $region5: #{tpu_custom_call.1} parent=0 // loop_body
    %s14 = ssub.s32 %s9, 1
    %s15 = ssub.s32 %s9, 2
    %s22 = sadd.s32 1, %s17
    %p23 = scmp.ge.s32.totalorder %s22, 1
    %s24 = scalar_select %p23, 0, %s22
    %s25 = sadd.s32 1, %s16
    %s26 = scalar_select %p23, %s25, %s16
    %p27 = scmp.ge.s32.totalorder %s26, 2
    %s28 = scalar_select %p27, 0, %s26
    %s29 = ssub.s32 %s16, %s28
    %s30 = ssub.s32 %s17, %s24
    %s31 = sor.u32 %s29, %s30
    %p32 = scmp.eq.s32.totalorder %s31, 0
    %s34 = sadd.s32 %s33, 1
    %s35 = scalar_select %p32, %s33, %s34
    %p38 = pneg %p32
    %p39 = scmp.eq.s32.totalorder %s9, 1
    %p40 = por %p38, %p39
    %p41 = scmp.ne.s32.totalorder %s33, %s36
    %p42 = scmp.eq.s32.totalorder %s9, 0
    %p43 = por %p41, %p42
    %p44 = scmp.ne.s32.totalorder %s33, %s36
    %p45 = scmp.eq.s32.totalorder %s14, 1
    %p46 = por %p44, %p45
    %p47 = scmp.ne.s32.totalorder %s36, %s37
    %p48 = scmp.eq.s32.totalorder %s14, 0
    %p49 = por %p47, %p48
    %p50 = scmp.ne.s32.totalorder %s36, %s37
    %p51 = scmp.eq.s32.totalorder %s15, 1
    %p52 = por %p50, %p51
    %p54 = scmp.ne.s32.totalorder %s37, %s53
    %p55 = scmp.eq.s32.totalorder %s15, 0
    %p56 = por %p54, %p55
    %s58 = sadd.s32 %s57, 1
    %p61 = scmp.eq.s32.totalorder %s9, 1
    %p62 = scmp.ne.s32.totalorder %s57, %s59
    %p63 = scmp.eq.s32.totalorder %s9, 0
    %p64 = por %p62, %p63
    %p65 = scmp.ne.s32.totalorder %s57, %s59
    %p66 = scmp.eq.s32.totalorder %s14, 1
    %p67 = por %p65, %p66
    %p68 = scmp.ne.s32.totalorder %s59, %s60
    %p69 = scmp.eq.s32.totalorder %s14, 0
    %p70 = por %p68, %p69
    %p71 = scmp.ne.s32.totalorder %s59, %s60
    %p72 = scmp.eq.s32.totalorder %s15, 1
    %p73 = por %p71, %p72
    %p75 = scmp.ne.s32.totalorder %s60, %s74
    %p76 = scmp.eq.s32.totalorder %s15, 0
    %p77 = por %p75, %p76
    %s78 = ssub.s32 %s17, %s24
    %p79 = scmp.eq.s32.totalorder %s78, 0
    %s81 = sadd.s32 %s80, 1
    %s82 = scalar_select %p79, %s80, %s81
    %p85 = pneg %p79
    %p86 = scmp.eq.s32.totalorder %s9, 1
    %p87 = por %p85, %p86
    %p88 = scmp.ne.s32.totalorder %s80, %s83
    %p89 = scmp.eq.s32.totalorder %s9, 0
    %p90 = por %p88, %p89
    %p91 = scmp.ne.s32.totalorder %s80, %s83
    %p92 = scmp.eq.s32.totalorder %s14, 1
    %p93 = por %p91, %p92
    %p94 = scmp.ne.s32.totalorder %s83, %s84
    %p95 = scmp.eq.s32.totalorder %s14, 0
    %p96 = por %p94, %p95
    %p97 = scmp.ne.s32.totalorder %s83, %s84
    %p98 = scmp.eq.s32.totalorder %s15, 1
    %p99 = por %p97, %p98
    %p101 = scmp.ne.s32.totalorder %s84, %s100
    %p102 = scmp.eq.s32.totalorder %s15, 0
    %p103 = por %p101, %p102
    %s104 = ssub.s32 %s16, %s28
    %s105 = ssub.s32 %s17, %s24
    %s106 = sor.u32 %s104, %s105
    %p107 = scmp.eq.s32.totalorder %s106, 0
    %s109 = sadd.s32 %s108, 1
    %s110 = scalar_select %p107, %s108, %s109
    %p113 = pneg %p107
    %p114 = scmp.eq.s32.totalorder %s9, 1
    %p115 = por %p113, %p114
    %p116 = scmp.ne.s32.totalorder %s108, %s111
    %p117 = scmp.eq.s32.totalorder %s9, 0
    %p118 = por %p116, %p117
    %p119 = scmp.ne.s32.totalorder %s108, %s111
    %p120 = scmp.eq.s32.totalorder %s14, 1
    %p121 = por %p119, %p120
    %p122 = scmp.ne.s32.totalorder %s111, %s112
    %p123 = scmp.eq.s32.totalorder %s14, 0
    %p124 = por %p122, %p123
    %p125 = scmp.ne.s32.totalorder %s111, %s112
    %p126 = scmp.eq.s32.totalorder %s15, 1
    %p127 = por %p125, %p126
    %p129 = scmp.ne.s32.totalorder %s112, %s128
    %p130 = scmp.eq.s32.totalorder %s15, 0
    %p131 = por %p129, %p130
    %p132 = scmp.le.s32.totalorder 1, %s9
    %p133 = scmp.lt.s32.totalorder %s9, 3
    %p134 = pnand %p132, %p133
    %p135 = pneg %p134
    // Predicated region
    $region9: #{tpu_custom_call.1} parent=5 // pred_check
      _
    $region10: #{tpu_custom_call.1} parent=5 // pred_check_branch
      %137 = sbr.rel (%p134) target = $region12
    $region11: #{tpu_custom_call.1} parent=5 // pred_region
      %s138 = ssub.s32 %s9, 1
      // Predicated region
      $region13: #{tpu_custom_call.1} parent=11 // pred_check
        %p139 = pneg %p70
      $region14: #{tpu_custom_call.1} parent=11 // pred_check_branch
        %141 = sbr.rel (%p139) target = $region16
      $region15: #{tpu_custom_call.1} parent=11 // pred_region
        _
      $region16: #{tpu_custom_call.1} parent=11 // pred_fallthru
        _
      // Predicated region
      $region17: #{tpu_custom_call.1} parent=11 // pred_check
        %p142 = pneg %p96
      $region18: #{tpu_custom_call.1} parent=11 // pred_check_branch
        %144 = sbr.rel (%p142) target = $region20
      $region19: #{tpu_custom_call.1} parent=11 // pred_region
        %s145 = smul.u32 3, %s19
        %p146 = scmp.lt.s32.totalorder %s145, 2
        %s147 = scalar_select %p146, %s145, 2
        %s148 = smul.addr %s147, 8
        %s149 = scalar_lea.vmem %s2, %s148
        %s150 = smul.u32 3, %s19
      $region20: #{tpu_custom_call.1} parent=11 // pred_fallthru
        _
    $region12: #{tpu_custom_call.1} parent=5 // pred_fallthru
      _
    %p151 = scmp.lt.s32.totalorder %s9, 2
    // Predicated region
    $region21: #{tpu_custom_call.1} parent=5 // pred_check
      %p152 = pneg %p151
    $region22: #{tpu_custom_call.1} parent=5 // pred_check_branch
      %154 = sbr.rel (%p152) target = $region24
    $region23: #{tpu_custom_call.1} parent=5 // pred_region
      // Predicated region
      $region25: #{tpu_custom_call.1} parent=23 // pred_check
        %p155 = pneg %p43
      $region26: #{tpu_custom_call.1} parent=23 // pred_check_branch
        %157 = sbr.rel (%p155) target = $region28
      $region27: #{tpu_custom_call.1} parent=23 // pred_region
        %s158 = smul.u32 3, %s17
        %p159 = scmp.lt.s32.totalorder %s16, 1
        %s160 = scalar_select %p159, %s16, 1
        %p161 = scmp.lt.s32.totalorder %s158, 2
        %s162 = scalar_select %p161, %s158, 2
        %s163 = smul.addr %s160, 3
        %s164 = sadd.s32 %s162, %s163
        %s165 = smul.addr %s164, 8
        %s166 = scalar_lea.vmem %s0, %s165
        %s167 = smul.u32 3, %s17
      $region28: #{tpu_custom_call.1} parent=23 // pred_fallthru
        _
    $region24: #{tpu_custom_call.1} parent=5 // pred_fallthru
      _
    %p168 = scmp.le.s32.totalorder 1, %s9
    %p169 = scmp.lt.s32.totalorder %s9, 3
    %p170 = pnand %p168, %p169
    %p171 = pneg %p170
    // Predicated region
    $region29: #{tpu_custom_call.1} parent=5 // pred_check
      _
    $region30: #{tpu_custom_call.1} parent=5 // pred_check_branch
      %173 = sbr.rel (%p170) target = $region32
    $region31: #{tpu_custom_call.1} parent=5 // pred_region
      %s174 = ssub.s32 %s9, 1
      %s175 = smul.u32 3, %s19
      %p176 = scmp.lt.s32.totalorder %s18, 1
      %s177 = scalar_select %p176, %s18, 1
      %p178 = scmp.lt.s32.totalorder %s175, 2
      %s179 = scalar_select %p178, %s175, 2
      %s180 = smul.addr %s177, 3
      %s181 = sadd.s32 %s179, %s180
      %s182 = smul.addr %s181, 8
      %s183 = scalar_lea.vmem %s0, %s182
      %p184 = pneg %p49
      %p185 = pneg %p46
      %p186 = pneg %p70
      %p187 = pneg %p67
      %s188 = smul.u32 3, %s19
      %p189 = scmp.lt.s32.totalorder %s188, 2
      %s190 = scalar_select %p189, %s188, 2
      %s191 = smul.addr %s190, 8
      %s192 = scalar_lea.vmem %s2, %s191
      %p193 = pneg %p96
      %p194 = pneg %p93
      %p195 = pneg %p124
      %p196 = pneg %p121
      %s197 = smul.u32 3, %s19
      %p198 = scmp.lt.s32.totalorder %s18, 1
      %s199 = scalar_select %p198, %s18, 1
      %p200 = scmp.lt.s32.totalorder %s197, 2
      %s201 = scalar_select %p200, %s197, 2
      %s202 = smul.addr %s199, 3
      %s203 = sadd.s32 %s201, %s202
      %s204 = smul.addr %s203, 8
      %s205 = scalar_lea.vmem %s3, %s204
      %s206 = smul.u32 3, %s19
      %p207 = scmp.lt.s32.totalorder %s18, 1
      %s208 = scalar_select %p207, %s18, 1
      %p209 = scmp.lt.s32.totalorder %s206, 2
      %s210 = scalar_select %p209, %s206, 2
      %s211 = smul.addr %s208, 3
      %s212 = sadd.s32 %s210, %s211
      %s213 = smul.addr %s212, 8
      %s214 = scalar_lea.vmem %s0, %s213
      %s215 = smul.u32 3, %s19
      %s216 = smul.u32 3, %s19
      %p217 = scmp.lt.s32.totalorder %s216, 2
      %s218 = scalar_select %p217, %s216, 2
      %s219 = smul.addr %s218, 8
      %s220 = scalar_lea.vmem %s2, %s219
      %s221 = smul.u32 3, %s19
      %s222 = smul.u32 3, %s19
      %p223 = scmp.lt.s32.totalorder %s18, 1
      %s224 = scalar_select %p223, %s18, 1
      %p225 = scmp.lt.s32.totalorder %s222, 2
      %s226 = scalar_select %p225, %s222, 2
      %s227 = smul.addr %s224, 3
      %s228 = sadd.s32 %s226, %s227
      %s229 = smul.addr %s228, 8
      %s230 = scalar_lea.vmem %s3, %s229
      %s231 = smul.u32 3, %s19
      %v232 = vld [vmem:[%s214] sm:$0xff]
      %v233 = vld [vmem:[%s214 + $0x8] sm:$0xff]
      %v234 = vld [vmem:[%s214 + $0x10] sm:$0x1]
      %v235 = vld [vmem:[%s1] sm:$0xff]
      %v236 = vld [vmem:[%s1 + $0x8] sm:$0xff]
      %v237 = vld [vmem:[%s1 + $0x10] sm:$0xff]
      %v238 = vld [vmem:[%s1 + $0x18] sm:$0xff]
      %v239 = vld [vmem:[%s220] sm:$0xff]
      %v240 = vld [vmem:[%s220 + $0x8] sm:$0xff]
      %v241 = vld [vmem:[%s220 + $0x10] sm:$0x1]
      %vm242 = vcmask 523264
      %v244 = vsel %vm242, %v232, 0
      %v247 = vsel %vm242, %v233, 0
      %v250 = vsel %vm242, %v234, 0
      %v253 = vsel %vm242, %v235, 0
      %v256 = vsel %vm242, %v236, 0
      %v259 = vsel %vm242, %v237, 0
      %v262 = vsel %vm242, %v238, 0
      %264 = vmatprep.subr.mxu0 0.0
      %265 = vmatpush1.xpose.msra.mxu0 %v253
      %266 = vmatprep.subr.mxu0 0.0
      %267 = vmatpush1.xpose.msra.mxu0 %v256
      %268 = vmatprep.subr.mxu0 0.0
      %269 = vmatpush1.xpose.msra.mxu0 %v259
      %270 = vmatprep.subr.mxu0 0.0
      %271 = vmatpush1.xpose.msra.mxu0 %v262
      %272 = vmatprep.subr.mxu0 0.0
      %273 = vmatpush1.xpose.msra.mxu0 0.0
      %274 = vmatprep.subr.mxu0 0.0
      %275 = vmatpush1.xpose.msra.mxu0 0.0
      %276 = vmatprep.subr.mxu0 0.0
      %277 = vmatpush1.xpose.msra.mxu0 0.0
      %278 = vmatprep.subr.mxu0 0.0
      %279 = vmatpush1.xpose.msra.mxu0 0.0
      %280 = vmatprep.subr.mxu0 0.0
      %281 = vmatpush1.xpose.msra.mxu0 0.0
      %282 = vmatprep.subr.mxu0 0.0
      %283 = vmatpush1.xpose.msra.mxu0 0.0
      %284 = vmatprep.subr.mxu0 0.0
      %285 = vmatpush1.xpose.msra.mxu0 0.0
      %286 = vmatprep.subr.mxu0 0.0
      %287 = vmatpush1.xpose.msra.mxu0 0.0
      %288 = vmatprep.subr.mxu0 0.0
      %289 = vmatpush1.xpose.msra.mxu0 0.0
      %290 = vmatprep.subr.mxu0 0.0
      %291 = vmatpush1.xpose.msra.mxu0 0.0
      %292 = vmatprep.subr.mxu0 0.0
      %293 = vmatpush1.xpose.msra.mxu0 0.0
      %294 = vmatprep.subr.mxu0 0.0
      %295 = vmatpush1.xpose.msra.mxu0 0.0
      %296 = vmatprep.subr.mxu0 0.0
      %297 = vmatpush1.xpose.msra.mxu0 0.0
      %298 = vmatprep.subr.mxu0 0.0
      %299 = vmatpush1.xpose.msra.mxu0 0.0
      %300 = vmatprep.subr.mxu0 0.0
      %301 = vmatpush1.xpose.msra.mxu0 0.0
      %302 = vmatprep.subr.mxu0 0.0
      %303 = vmatpush1.xpose.msra.mxu0 0.0
      %304 = vmatprep.subr.mxu0 0.0
      %305 = vmatpush1.xpose.msra.mxu0 0.0
      %306 = vmatprep.subr.mxu0 0.0
      %307 = vmatpush1.xpose.msra.mxu0 0.0
      %308 = vmatprep.subr.mxu0 0.0
      %309 = vmatpush1.xpose.msra.mxu0 0.0
      %310 = vmatprep.subr.mxu0 0.0
      %311 = vmatpush1.xpose.msra.mxu0 0.0
      %312 = vmatprep.subr.mxu0 0.0
      %313 = vmatpush1.xpose.msra.mxu0 0.0
      %314 = vmatprep.subr.mxu0 0.0
      %315 = vmatpush1.xpose.msra.mxu0 0.0
      %316 = vmatprep.subr.mxu0 0.0
      %317 = vmatpush1.xpose.msra.mxu0 0.0
      %318 = vmatprep.subr.mxu0 0.0
      %319 = vmatpush1.xpose.msra.mxu0 0.0
      %320 = vmatprep.subr.mxu0 0.0
      %321 = vmatpush1.xpose.msra.mxu0 0.0
      %322 = vmatprep.subr.mxu0 0.0
      %323 = vmatpush1.xpose.msra.mxu0 0.0
      %324 = vmatprep.subr.mxu0 0.0
      %325 = vmatpush1.xpose.msra.mxu0 0.0
      %326 = vmatprep.subr.mxu0 0.0
      %327 = vmatpush1.xpose.msra.mxu0 0.0
      %328 = vmatprep.mubr.f32.mxu0 0.0
      %329 = vmatmul.mubr.f32.gmra.mrb[0].mxu0 %v244
      %v330 = vpop.f32.mrb[0].mxu0
      %v331 = vadd.f32 %v239, %v330
      %v332 = vpop.f32.mrb[0].mxu0
      %333 = vmatprep.mubr.f32.mxu0 0.0
      %334 = vmatmul.mubr.f32.gmra.mrb[0].mxu0 %v247
      %v335 = vpop.f32.mrb[0].mxu0
      %v336 = vadd.f32 %v240, %v335
      %v337 = vpop.f32.mrb[0].mxu0
      %338 = vmatprep.mubr.f32.mxu0 0.0
      %339 = vmatmul.mubr.f32.gmra.mrb[0].mxu0 %v250
      %v340 = vpop.f32.mrb[0].mxu0
      %v341 = vadd.f32 %v241, %v340
      %v342 = vpop.f32.mrb[0].mxu0
      %343 = vdwg.mxu0
      %vm344 = vcmask 261120
      %345 = vst.msk [vmem:[%s230] sm:$0xff] %vm344, %v331
      %346 = vst.msk [vmem:[%s230 + $0x8] sm:$0xff] %vm344, %v336
      %vm347 = vcmask 253952
      %348 = vst.msk [vmem:[%s230 + $0x10] sm:$0x1] %vm347, %v341
      %s349 = smul.u32 3, %s19
      %p350 = scmp.lt.s32.totalorder %s18, 1
      %s351 = scalar_select %p350, %s18, 1
      %p352 = scmp.lt.s32.totalorder %s349, 2
      %s353 = scalar_select %p352, %s349, 2
      %s354 = smul.addr %s351, 3
      %s355 = sadd.s32 %s353, %s354
      %s356 = smul.addr %s355, 8
      %s357 = scalar_lea.vmem %s3, %s356
      // Predicated region
      $region33: #{tpu_custom_call.1} parent=31 // pred_check
        %p358 = pneg %p121
      $region34: #{tpu_custom_call.1} parent=31 // pred_check_branch
        %360 = sbr.rel (%p358) target = $region36
      $region35: #{tpu_custom_call.1} parent=31 // pred_region
        %s361 = smul.u32 3, %s19
      $region36: #{tpu_custom_call.1} parent=31 // pred_fallthru
        _
    $region32: #{tpu_custom_call.1} parent=5 // pred_fallthru
      _
    %p362 = scmp.le.s32.totalorder 2, %s9
    // Predicated region
    $region37: #{tpu_custom_call.1} parent=5 // pred_check
      %p363 = pneg %p362
    $region38: #{tpu_custom_call.1} parent=5 // pred_check_branch
      %365 = sbr.rel (%p363) target = $region40
    $region39: #{tpu_custom_call.1} parent=5 // pred_region
      %s366 = ssub.s32 %s9, 2
      // Predicated region
      $region41: #{tpu_custom_call.1} parent=39 // pred_check
        %p367 = pneg %p127
      $region42: #{tpu_custom_call.1} parent=39 // pred_check_branch
        %369 = sbr.rel (%p367) target = $region44
      $region43: #{tpu_custom_call.1} parent=39 // pred_region
        %s370 = smul.u32 3, %s21
        %p371 = scmp.lt.s32.totalorder %s20, 1
        %s372 = scalar_select %p371, %s20, 1
        %p373 = scmp.lt.s32.totalorder %s370, 2
        %s374 = scalar_select %p373, %s370, 2
        %s375 = smul.addr %s372, 3
        %s376 = sadd.s32 %s374, %s375
        %s377 = smul.addr %s376, 8
        %s378 = scalar_lea.vmem %s3, %s377
      $region44: #{tpu_custom_call.1} parent=39 // pred_fallthru
        _
    $region40: #{tpu_custom_call.1} parent=5 // pred_fallthru
      _
  $region6: #{tpu_custom_call.1} parent=0 // loop_footer
    %s13 = sadd.s32 1, %s9
  $region7: #{tpu_custom_call.1} parent=0 // loop_footer_branch
    %8 = sbr.rel target = $region3
  $region8: #{tpu_custom_call.1} parent=0 // loop_exit
    _

</llo_original>
